<compile_context>
chip_gen: v5e
topology: v5e:2x2
jax: 0.10.0
libtpu: 0.0.40
codegen_flags: <defaults>
</compile_context>

<pallas_src>
import jax
import jax.numpy as jnp
from jax import lax
from jax.experimental import pallas as pl
from jax.experimental.pallas import tpu as pltpu


def _bilinear_matrix(in_size: int, out_size: int) -> jnp.ndarray:
    """Dense (out_size, in_size) bilinear interpolation matrix, align_corners=True."""
    if in_size == 1:
        return jnp.ones((out_size, 1), jnp.float32)
    i = jnp.arange(out_size, dtype=jnp.float32)
    src = i * (in_size - 1) / (out_size - 1)
    i0 = jnp.clip(jnp.floor(src).astype(jnp.int32), 0, in_size - 1)
    i1 = jnp.clip(i0 + 1, 0, in_size - 1)
    frac = src - i0.astype(jnp.float32)
    cols = jnp.arange(in_size, dtype=jnp.int32)
    m0 = (cols[None, :] == i0[:, None]).astype(jnp.float32) * (1.0 - frac)[:, None]
    m1 = (cols[None, :] == i1[:, None]).astype(jnp.float32) * frac[:, None]
    return m0 + m1


def _fold_conv_weights(w_hwio: jnp.ndarray, W: int) -> jnp.ndarray:
    """Fold dx taps + width zero-padding of a 3x3 conv into ONE fused matrix.

    Returns A of shape (W*Cin, 3*W*Cout) with
      A[w_in*Cin + cin, dy*W*Cout + w_out*Cout + cout] = w[dy, w_in - w_out + 1, cin, cout]
    and zero when the dx tap falls outside the kernel (this also implements the
    padding=1 behaviour along the W dimension).  The dy taps are stacked on the
    N axis so the conv is a single MXU matmul; c_dy is a lane slice of the result.
    """
    w_in = jnp.arange(W)
    w_out = jnp.arange(W)
    dx = w_in[:, None] - w_out[None, :] + 1                       # (W_in, W_out)
    valid = (dx >= 0) & (dx <= 2)
    taps = w_hwio[:, jnp.clip(dx, 0, 2)]                          # (3, W_in, W_out, Cin, Cout)
    taps = jnp.where(valid[None, :, :, None, None], taps, 0.0)
    Cin, Cout = w_hwio.shape[2], w_hwio.shape[3]
    # -> (W_in, Cin, dy, W_out, Cout) -> (W*Cin, 3*W*Cout)
    return taps.transpose(1, 3, 0, 2, 4).reshape(W * Cin, 3 * W * Cout)


def _up_kernel(x_ref, a_ref, b_ref, wh_ref, wwk_ref, o_ref):
    # x_ref:   (Bt, H, W*Cin)        lane-packed input block (Bt images)
    # a_ref:   (W*Cin, 3*W*Cout)     fused conv weights (dx taps + W-padding, dy on N)
    # b_ref:   (1, W*Cout)           conv bias tiled over W (f32)
    # wh_ref:  (2H, H)               height interpolation matrix
    # wwk_ref: (W*Cout, 2W*Cout)     width interpolation matrix kron'd with I_Cout
    # o_ref:   (Bt, 2H, 2W*Cout)     lane-dense output block
    Bt, H, _ = x_ref.shape
    WCo = b_ref.shape[1]
    Ho = wh_ref.shape[0]
    M = Bt * H

    x = x_ref[...].reshape(M, -1).astype(a_ref.dtype)      # bf16 (or f32) MXU operand

    # --- Conv2d 3x3 (padding=1): ONE fused MXU matmul, K = W*Cin, N = 3*W*Cout,
    #     f32 accumulate.  c_dy = contribution through kernel row dy.
    c = jnp.dot(x, a_ref[...], preferred_element_type=jnp.float32)   # (M, 3*WCo)
    c0 = c[:, 0 * WCo:1 * WCo]        # free lane slices: WCo is a multiple of 128
    c1 = c[:, 1 * WCo:2 * WCo]
    c2 = c[:, 2 * WCo:3 * WCo]

    # dy = +-1 row shifts via XLU roll + narrow (M,1) mask (implements padding=1
    # along H).  (row % H) keeps the masks correct at image boundaries inside the
    # Bt-batched block: the roll bleed lands only in rows the mask zeroes.
    rh = lax.broadcasted_iota(jnp.int32, (M, 1), 0) % H
    top = jnp.where(rh >= 1, pltpu.roll(c0, 1, 0), 0.0)              # conv[h] += c0[h-1]
    bot = jnp.where(rh <= H - 2, pltpu.roll(c2, M - 1, 0), 0.0)      # conv[h] += c2[h+1]

    y = jnp.maximum(c1 + top + bot + b_ref[...], 0.0)                # bias + ReLU, (M, WCo)

    # --- Bilinear x2 upsample (align_corners=True): width first (plain matmul on
    # the flat block), then height as a Bt-batched matmul.  No transposes.
    u = jnp.dot(y.astype(wwk_ref.dtype), wwk_ref[...],
                preferred_element_type=jnp.float32)                  # (M, 2*WCo)
    ub = u.reshape(Bt, H, 2 * WCo).astype(wh_ref.dtype)
    wh_b = jnp.broadcast_to(wh_ref[...], (Bt, Ho, H))
    o = jnp.einsum("boh,bhd->bod", wh_b, ub,
                   preferred_element_type=jnp.float32)               # (Bt, 2H, 2*WCo)
    o_ref[...] = o.astype(o_ref.dtype)


def _pick_bt(B: int, H: int, target_rows: int = 256) -> int:
    """Largest divisor of B such that Bt*H <= target_rows (fills the MXU M dim)."""
    best = 1
    for d in range(1, B + 1):
        if B % d == 0 and d * H <= target_rows:
            best = d
    return best


def up_forward(x_nhwc, w_hwio, b, *, use_bf16=True, out_dtype=jnp.float32,
               interpret=False):
    """Forward of Up (bn=False). x_nhwc: (B,H,W,Cin) f32; w_hwio: (3,3,Cin,Cout); b: (Cout,)."""
    B, H, W, Cin = x_nhwc.shape
    Cout = w_hwio.shape[3]
    Ho, Wo = 2 * H, 2 * W
    mat_dtype = jnp.bfloat16 if use_bf16 else jnp.float32
    itemsize = jnp.dtype(mat_dtype).itemsize

    Bt = _pick_bt(B, H)                                              # images per grid step
    n_steps = B // Bt

    # One-time tiny operand prep (weights only -- no extra HBM pass over x).
    A = _fold_conv_weights(w_hwio, W).astype(mat_dtype)              # (W*Cin, 3*W*Cout)
    wh = _bilinear_matrix(H, Ho).astype(mat_dtype)                   # (2H, H)
    ww = _bilinear_matrix(W, Wo)                                     # (2W, W)
    wwk = jnp.einsum("Ww,cd->wcWd", ww, jnp.eye(Cout, dtype=jnp.float32)
                     ).reshape(W * Cout, Wo * Cout).astype(mat_dtype)
    b_p = jnp.tile(b.astype(jnp.float32), (W,)).reshape(1, W * Cout)

    x_p = x_nhwc.reshape(B, H, W * Cin)                              # free reshape, no pad

    # --- VMEM budget: double-buffered in/out/weight blocks + f32 kernel temporaries.
    in_blk = Bt * H * W * Cin * x_p.dtype.itemsize
    out_blk = Bt * Ho * Wo * Cout * jnp.dtype(out_dtype).itemsize
    wt_blk = (A.size + wh.size + wwk.size) * itemsize + b_p.size * 4
    interm = (Bt * H * (W * Cin * itemsize                 # x cast
                        + 3 * W * Cout * 4                 # fused conv result c
                        + 4 * W * Cout * 4                 # top/bot/y + cast copy
                        + 2 * Wo * Cout * 4)               # u (+ cast copy)
              + Bt * Ho * Wo * Cout * 4)                   # o before store cast
    blk_bytes = 2 * (in_blk + out_blk + wt_blk) + interm
    try:
        cap = int(getattr(pltpu.get_tpu_info(), "vmem_capacity_bytes"))
    except Exception:
        cap = 64 * 2 ** 20                                  # conservative (v7x per-TC)
    vmem_limit = int(max(32 * 2 ** 20, min((3 * cap) // 4, 2 * blk_bytes)))

    out = pl.pallas_call(
        _up_kernel,
        out_shape=jax.ShapeDtypeStruct((B, Ho, Wo * Cout), out_dtype),
        grid_spec=pltpu.PrefetchScalarGridSpec(
            num_scalar_prefetch=0,
            grid=(n_steps,),
            in_specs=[
                pl.BlockSpec((Bt, H, W * Cin), lambda bi: (bi, 0, 0)),
                pl.BlockSpec((W * Cin, 3 * W * Cout), lambda bi: (0, 0)),
                pl.BlockSpec((1, W * Cout), lambda bi: (0, 0)),
                pl.BlockSpec((Ho, H), lambda bi: (0, 0)),
                pl.BlockSpec((W * Cout, Wo * Cout), lambda bi: (0, 0)),
            ],
            out_specs=pl.BlockSpec((Bt, Ho, Wo * Cout), lambda bi: (bi, 0, 0)),
        ),
        compiler_params=pltpu.CompilerParams(
            dimension_semantics=("parallel",),
            vmem_limit_bytes=vmem_limit),
        interpret=interpret,
    )(x_p, A, b_p, wh, wwk)

    return out.reshape(B, Ho, Wo, Cout)


def _reference(x_nhwc, w_hwio, b):
    """Pure-JAX reference (conv -> bias -> ReLU -> bilinear x2, align_corners=True)."""
    y = lax.conv_general_dilated(
        x_nhwc, w_hwio, window_strides=(1, 1), padding=((1, 1), (1, 1)),
        dimension_numbers=("NHWC", "HWIO", "NHWC"))
    y = jax.nn.relu(y + b[None, None, None, :])
    B, H, W, C = y.shape
    wh = _bilinear_matrix(H, 2 * H)
    ww = _bilinear_matrix(W, 2 * W)
    return jnp.einsum("Hh,bhwc,Ww->bHWc", wh, y, ww)


if __name__ == "__main__":
    key = jax.random.PRNGKey(0)
    k_x, k_w, k_b = jax.random.split(key, 3)

    B, Cin, Cout, H, W = 2, 4, 8, 16, 16
    # construct in NCHW (PyTorch convention) then move to NHWC kernel layout
    x_nchw = jax.random.normal(k_x, (B, Cin, H, W), dtype=jnp.float32)
    x_nhwc = jnp.transpose(x_nchw, (0, 2, 3, 1))
    # conv weights: PyTorch shape (Cout, Cin, 3, 3) -> HWIO (3, 3, Cin, Cout)
    w_oihw = jax.random.normal(k_w, (Cout, Cin, 3, 3), dtype=jnp.float32) * 0.1
    w_hwio = jnp.transpose(w_oihw, (2, 3, 1, 0))
    b = jax.random.normal(k_b, (Cout,), dtype=jnp.float32) * 0.1

    ref = _reference(x_nhwc, w_hwio, b)

    # Bit-exact f32 path (validates fused-A / batched-roll-mask / kron formulation).
    out_f32 = jax.block_until_ready(up_forward(x_nhwc, w_hwio, b, use_bf16=False))
    assert out_f32.shape == (B, 2 * H, 2 * W, Cout)
    err_f32 = float(jnp.max(jnp.abs(out_f32 - ref)))
    assert err_f32 < 1e-4, f"f32 path mismatch: {err_f32}"

    # Default fast path: bf16 MXU operands, f32 accumulation (looser tolerance).
    out_bf16 = jax.block_until_ready(up_forward(x_nhwc, w_hwio, b, use_bf16=True))
    err_bf16 = float(jnp.max(jnp.abs(out_bf16 - ref)))
    tol = 3e-2 * max(1.0, float(jnp.max(jnp.abs(ref))))
    assert err_bf16 < tol, f"bf16 path mismatch: {err_bf16} (tol {tol})"

    print("KERNEL_OK")
</pallas_src>

<mosaic_0001>
module attributes {stable_mosaic.version = 11 : i64} {
  func.func @_up_kernel(%arg0: i32, %arg1: memref<2x16x64xf32, #tpu.memory_space<vmem>>, %arg2: memref<64x384xf32, #tpu.memory_space<vmem>>, %arg3: memref<1x128xf32, #tpu.memory_space<vmem>>, %arg4: memref<32x16xf32, #tpu.memory_space<vmem>>, %arg5: memref<128x256xf32, #tpu.memory_space<vmem>>, %arg6: memref<2x32x256xf32, #tpu.memory_space<vmem>>) attributes {dimension_semantics = [#tpu.dimension_semantics<parallel>], iteration_bounds = array<i64: 1>, scalar_prefetch = 0 : i64, scratch_operands = 0 : i64, tpu.core_type = #tpu.core_type<tc>, window_params = [{transform_indices = @transform_0, window_bounds = array<i64: 2, 16, 64>}, {pipeline_mode = #tpu.pipeline_mode<synchronous>, transform_indices = @transform_1, window_bounds = array<i64: 64, 384>}, {pipeline_mode = #tpu.pipeline_mode<synchronous>, transform_indices = @transform_2, window_bounds = array<i64: 1, 128>}, {pipeline_mode = #tpu.pipeline_mode<synchronous>, transform_indices = @transform_3, window_bounds = array<i64: 32, 16>}, {pipeline_mode = #tpu.pipeline_mode<synchronous>, transform_indices = @transform_4, window_bounds = array<i64: 128, 256>}, {transform_indices = @transform_5, window_bounds = array<i64: 2, 32, 256>}]} {
    %c0 = arith.constant 0 : index
    %c0_0 = arith.constant 0 : index
    %c0_1 = arith.constant 0 : index
    %0 = vector.load %arg1[%c0, %c0_0, %c0_1] : memref<2x16x64xf32, #tpu.memory_space<vmem>>, vector<2x16x64xf32>
    %1 = vector.shape_cast %0 : vector<2x16x64xf32> to vector<32x64xf32>
    %c0_2 = arith.constant 0 : index
    %c0_3 = arith.constant 0 : index
    %2 = vector.load %arg2[%c0_2, %c0_3] : memref<64x384xf32, #tpu.memory_space<vmem>>, vector<64x384xf32>
    %cst = arith.constant dense<0.000000e+00> : vector<32x384xf32>
    %3 = tpu.matmul %1, %2, %cst {dimension_numbers = #tpu.dot_dimension_numbers<[1], [0], [0], [1], [0, 0, 1, 1], [], []>} : vector<32x64xf32>, vector<64x384xf32>, vector<32x384xf32> -> vector<32x384xf32>
    %4 = vector.extract_strided_slice %3 {offsets = [0, 0], sizes = [32, 128], strides = [1, 1]} : vector<32x384xf32> to vector<32x128xf32>
    %5 = vector.extract_strided_slice %3 {offsets = [0, 128], sizes = [32, 128], strides = [1, 1]} : vector<32x384xf32> to vector<32x128xf32>
    %6 = vector.extract_strided_slice %3 {offsets = [0, 256], sizes = [32, 128], strides = [1, 1]} : vector<32x384xf32> to vector<32x128xf32>
    %7 = tpu.iota {dimensions = array<i32: 0>} : vector<32x1xi32>
    %c16_i32 = arith.constant 16 : i32
    %c0_i32 = arith.constant 0 : i32
    %8 = arith.cmpi eq, %c16_i32, %c0_i32 : i32
    %c1_i32 = arith.constant 1 : i32
    %9 = arith.select %8, %c1_i32, %c16_i32 : i32
    %10 = vector.broadcast %9 : i32 to vector<32x1xi32>
    %11 = arith.remsi %7, %10 : vector<32x1xi32>
    %c0_i32_4 = arith.constant 0 : i32
    %12 = vector.broadcast %c0_i32_4 : i32 to vector<32x1xi32>
    %13 = arith.cmpi ne, %11, %12 : vector<32x1xi32>
    %c0_i32_5 = arith.constant 0 : i32
    %14 = vector.broadcast %c0_i32_5 : i32 to vector<32x1xi32>
    %15 = arith.cmpi slt, %11, %14 : vector<32x1xi32>
    %c0_i32_6 = arith.constant 0 : i32
    %16 = arith.cmpi slt, %9, %c0_i32_6 : i32
    %17 = vector.broadcast %16 : i1 to vector<32x1xi1>
    %18 = vector.broadcast %17 : vector<32x1xi1> to vector<32x1xi1>
    %19 = arith.xori %15, %18 : vector<32x1xi1>
    %20 = arith.andi %19, %13 : vector<32x1xi1>
    %21 = vector.broadcast %9 : i32 to vector<32x1xi32>
    %22 = arith.addi %11, %21 : vector<32x1xi32>
    %23 = arith.select %20, %22, %11 : vector<32x1xi1>, vector<32x1xi32>
    %c1_i32_7 = arith.constant 1 : i32
    %24 = vector.broadcast %c1_i32_7 : i32 to vector<32x1xi32>
    %25 = arith.cmpi sge, %23, %24 : vector<32x1xi32>
    %c1_i32_8 = arith.constant 1 : i32
    %26 = tpu.dynamic_rotate %4 by %c1_i32_8 dim 0 : vector<32x128xf32>, i32 -> vector<32x128xf32>
    %cst_9 = arith.constant 0.000000e+00 : f32
    %27 = vector.shape_cast %25 : vector<32x1xi1> to vector<32x1xi1>
    %28 = vector.broadcast %27 : vector<32x1xi1> to vector<32x128xi1>
    %29 = vector.broadcast %cst_9 : f32 to vector<32x128xf32>
    %30 = arith.select %28, %26, %29 : vector<32x128xi1>, vector<32x128xf32>
    %c14_i32 = arith.constant 14 : i32
    %31 = vector.broadcast %c14_i32 : i32 to vector<32x1xi32>
    %32 = arith.cmpi sle, %23, %31 : vector<32x1xi32>
    %c31_i32 = arith.constant 31 : i32
    %33 = tpu.dynamic_rotate %6 by %c31_i32 dim 0 : vector<32x128xf32>, i32 -> vector<32x128xf32>
    %cst_10 = arith.constant 0.000000e+00 : f32
    %34 = vector.shape_cast %32 : vector<32x1xi1> to vector<32x1xi1>
    %35 = vector.broadcast %34 : vector<32x1xi1> to vector<32x128xi1>
    %36 = vector.broadcast %cst_10 : f32 to vector<32x128xf32>
    %37 = arith.select %35, %33, %36 : vector<32x128xi1>, vector<32x128xf32>
    %38 = arith.addf %5, %30 : vector<32x128xf32>
    %39 = arith.addf %38, %37 : vector<32x128xf32>
    %c0_11 = arith.constant 0 : index
    %c0_12 = arith.constant 0 : index
    %40 = vector.load %arg3[%c0_11, %c0_12] : memref<1x128xf32, #tpu.memory_space<vmem>>, vector<1x128xf32>
    %41 = vector.broadcast %40 : vector<1x128xf32> to vector<32x128xf32>
    %42 = arith.addf %39, %41 : vector<32x128xf32>
    %cst_13 = arith.constant 0.000000e+00 : f32
    %43 = vector.broadcast %cst_13 : f32 to vector<32x128xf32>
    %44 = arith.maximumf %42, %43 : vector<32x128xf32>
    %c0_14 = arith.constant 0 : index
    %c0_15 = arith.constant 0 : index
    %45 = vector.load %arg5[%c0_14, %c0_15] : memref<128x256xf32, #tpu.memory_space<vmem>>, vector<128x256xf32>
    %cst_16 = arith.constant dense<0.000000e+00> : vector<32x256xf32>
    %46 = tpu.matmul %44, %45, %cst_16 {dimension_numbers = #tpu.dot_dimension_numbers<[1], [0], [0], [1], [0, 0, 1, 1], [], []>} : vector<32x128xf32>, vector<128x256xf32>, vector<32x256xf32> -> vector<32x256xf32>
    %47 = vector.shape_cast %46 : vector<32x256xf32> to vector<2x16x256xf32>
    %c0_17 = arith.constant 0 : index
    %c0_18 = arith.constant 0 : index
    %48 = vector.load %arg4[%c0_17, %c0_18] : memref<32x16xf32, #tpu.memory_space<vmem>>, vector<32x16xf32>
    %49 = vector.shape_cast %48 : vector<32x16xf32> to vector<1x32x16xf32>
    %50 = vector.broadcast %49 : vector<1x32x16xf32> to vector<2x32x16xf32>
    "tpu.trace_start"() <{level = 10 : i32, message = "boh,bhd->bod"}> : () -> ()
    %cst_19 = arith.constant dense<0.000000e+00> : vector<2x32x256xf32>
    %51 = tpu.matmul %50, %47, %cst_19 {dimension_numbers = #tpu.dot_dimension_numbers<[2], [1], [1], [2], [0, 0, 0, 1, 1, 2], [0], [0]>} : vector<2x32x16xf32>, vector<2x16x256xf32>, vector<2x32x256xf32> -> vector<2x32x256xf32>
    "tpu.trace_stop"() : () -> ()
    %c0_20 = arith.constant 0 : index
    %c0_21 = arith.constant 0 : index
    %c0_22 = arith.constant 0 : index
    %52 = vector.load %arg6[%c0_20, %c0_21, %c0_22] : memref<2x32x256xf32, #tpu.memory_space<vmem>>, vector<2x32x256xf32>
    tpu.vector_store %arg6[%c0_20, %c0_21, %c0_22], %51 {strides = array<i32>} : memref<2x32x256xf32, #tpu.memory_space<vmem>>, vector<2x32x256xf32>,
    return
  }
  func.func @transform_0(%arg0: i32) -> (i32, i32, i32) {
    %c0_i32 = arith.constant 0 : i32
    %c0_i32_0 = arith.constant 0 : i32
    %c0_i32_1 = arith.constant 0 : i32
    return %arg0, %c0_i32, %c0_i32_0 : i32, i32, i32
  }
  func.func @transform_1(%arg0: i32) -> (i32, i32) {
    %c0_i32 = arith.constant 0 : i32
    %c0_i32_0 = arith.constant 0 : i32
    %c0_i32_1 = arith.constant 0 : i32
    return %c0_i32, %c0_i32_0 : i32, i32
  }
  func.func @transform_2(%arg0: i32) -> (i32, i32) {
    %c0_i32 = arith.constant 0 : i32
    %c0_i32_0 = arith.constant 0 : i32
    %c0_i32_1 = arith.constant 0 : i32
    return %c0_i32, %c0_i32_0 : i32, i32
  }
  func.func @transform_3(%arg0: i32) -> (i32, i32) {
    %c0_i32 = arith.constant 0 : i32
    %c0_i32_0 = arith.constant 0 : i32
    %c0_i32_1 = arith.constant 0 : i32
    return %c0_i32, %c0_i32_0 : i32, i32
  }
  func.func @transform_4(%arg0: i32) -> (i32, i32) {
    %c0_i32 = arith.constant 0 : i32
    %c0_i32_0 = arith.constant 0 : i32
    %c0_i32_1 = arith.constant 0 : i32
    return %c0_i32, %c0_i32_0 : i32, i32
  }
  func.func @transform_5(%arg0: i32) -> (i32, i32, i32) {
    %c0_i32 = arith.constant 0 : i32
    %c0_i32_0 = arith.constant 0 : i32
    %c0_i32_1 = arith.constant 0 : i32
    return %arg0, %c0_i32, %c0_i32_0 : i32, i32, i32
  }
}

</mosaic_0001>

<llo_original>
// kernel: tpu_custom_call.1
$region0: #{tpu_custom_call.1}
  #allocation0 [shape = 'u32[]', space=smem, size = 0x4, offset = 0x4, fixed_abs, tag = 'smem constant byte address 0x4 - core index']
  #allocation1 [shape = 'u32[72,128]{1,0:T(1,128)}', space=vmem, size = 0x9000, scoped, tag = 'internal scratch']
  %s0 = inlined_call_operand.vmem [shape: f32[2,16,64], index: 0, kind: input, shape index: {}]
  %s1 = inlined_call_operand.hbm [shape: f32[64,384], index: 1, kind: input, shape index: {}]
  %s2 = inlined_call_operand.vmem [shape: f32[1,128], index: 2, kind: input, shape index: {}]
  %s3 = inlined_call_operand.vmem [shape: f32[32,16], index: 3, kind: input, shape index: {}]
  %s4 = inlined_call_operand.hbm [shape: f32[128,256], index: 4, kind: input, shape index: {}]
  %s5 = inlined_call_operand.hbm [shape: f32[2,32,256], index: 5, kind: output, shape index: {}]
  %s6 = sld [smem:[#allocation0]]
  $region38: #{tpu_custom_call.1} parent=0
    _
  %s8 = ssub.s32 1, %s6
  %s9 = scalar_select 0, %s8, %s6
  $region1: #{tpu_custom_call.1} parent=0
    #allocation2 [shape = 'u8[98304]{0}', space=vmem, size = 0x18000, scoped, tag = 'input window, operand 1, single buffered']
    #allocation3 [shape = 's32[1]{0}', space=sflag, size = 0x4, scoped, tag = 'scoped memory for tpu_custom_call.1']
    #allocation4 [shape = 's32[1]{0}', space=sflag, size = 0x4, scoped, tag = 'scoped memory for tpu_custom_call.1']
    #allocation5 [shape = 'u8[131072]{0}', space=vmem, size = 0x20000, scoped, tag = 'input window, operand 4, single buffered']
    #allocation6 [shape = 's32[1]{0}', space=sflag, size = 0x4, scoped, tag = 'scoped memory for tpu_custom_call.1']
    #allocation7 [shape = 'u8[65536]{0}', space=vmem, size = 0x10000, scoped, tag = 'output window, operand 0, single buffered']
    %10 = vsyncpa [#allocation3], 0
    %11 = vsyncpa [#allocation6], 0
    %12 = vsyncpa [#allocation4], 0
    // Predicated region
    $region2: #{tpu_custom_call.1} parent=1 // pred_check
      _
    $region3: #{tpu_custom_call.1} parent=1 // pred_check_branch
      %14 = sbr.rel (0) target = $region5
    $region4: #{tpu_custom_call.1} parent=1 // pred_region
      _
    $region5: #{tpu_custom_call.1} parent=1 // pred_fallthru
      _
    // Predicated region
    $region6: #{tpu_custom_call.1} parent=1 // pred_check
      _
    $region7: #{tpu_custom_call.1} parent=1 // pred_check_branch
      %16 = sbr.rel (0) target = $region9
    $region8: #{tpu_custom_call.1} parent=1 // pred_region
      %18 = vsyncadd [#allocation3], 0
      %s19 = sshll.u32 %s1, 4
      %s20 = int_to_ptr.hbm [resolvable:$true] %s19
      %s21 = sshll.u32 [#allocation2], 4
      %s22 = int_to_ptr.vmem [resolvable:$true] %s21
      %27 = dma.hbm_to_vmem [thread:$0]  %s20, 3072, %s22, [#allocation3], 384, 384, 24
    $region9: #{tpu_custom_call.1} parent=1 // pred_fallthru
      _
    // Predicated region
    $region10: #{tpu_custom_call.1} parent=1 // pred_check
      _
    $region11: #{tpu_custom_call.1} parent=1 // pred_check_branch
      %29 = sbr.rel (0) target = $region13
    $region12: #{tpu_custom_call.1} parent=1 // pred_region
      _
    $region13: #{tpu_custom_call.1} parent=1 // pred_fallthru
      _
    // Predicated region
    $region14: #{tpu_custom_call.1} parent=1 // pred_check
      _
    $region15: #{tpu_custom_call.1} parent=1 // pred_check_branch
      %31 = sbr.rel (0) target = $region17
    $region16: #{tpu_custom_call.1} parent=1 // pred_region
      _
    $region17: #{tpu_custom_call.1} parent=1 // pred_fallthru
      _
    // Predicated region
    $region18: #{tpu_custom_call.1} parent=1 // pred_check
      _
    $region19: #{tpu_custom_call.1} parent=1 // pred_check_branch
      %33 = sbr.rel (0) target = $region21
    $region20: #{tpu_custom_call.1} parent=1 // pred_region
      %35 = vsyncadd [#allocation6], 0
      %s36 = sshll.u32 %s4, 4
      %s37 = int_to_ptr.hbm [resolvable:$true] %s36
      %s38 = sshll.u32 [#allocation5], 4
      %s39 = int_to_ptr.vmem [resolvable:$true] %s38
      %44 = dma.hbm_to_vmem [thread:$0]  %s37, 4096, %s39, [#allocation6], 256, 256, 16
    $region21: #{tpu_custom_call.1} parent=1 // pred_fallthru
      _
    // Predicated region
    $region22: #{tpu_custom_call.1} parent=1 // pred_check
      _
    $region23: #{tpu_custom_call.1} parent=1 // pred_check_branch
      %46 = sbr.rel (0) target = $region25
    $region24: #{tpu_custom_call.1} parent=1 // pred_region
      %48 = dma.done [#allocation3], 3072
    $region25: #{tpu_custom_call.1} parent=1 // pred_fallthru
      _
    // Predicated region
    $region26: #{tpu_custom_call.1} parent=1 // pred_check
      _
    $region27: #{tpu_custom_call.1} parent=1 // pred_check_branch
      %50 = sbr.rel (0) target = $region29
    $region28: #{tpu_custom_call.1} parent=1 // pred_region
      %52 = dma.done [#allocation6], 4096
    $region29: #{tpu_custom_call.1} parent=1 // pred_fallthru
      _
    %v53 = vld [vmem:[%s0] sm:$0xff]
    %v54 = vld [vmem:[%s0 + $0x8] sm:$0xff]
    %v55 = vld [vmem:[%s0 + $0x10] sm:$0xff]
    %v56 = vld [vmem:[%s0 + $0x18] sm:$0xff]
    %v57 = vld [vmem:[#allocation2] sm:$0xff]
    %v58 = vld [vmem:[#allocation2 + $0x8] sm:$0xff]
    %v59 = vld [vmem:[#allocation2 + $0x10] sm:$0xff]
    %v60 = vld [vmem:[#allocation2 + $0x18] sm:$0xff]
    %v61 = vld [vmem:[#allocation2 + $0x20] sm:$0xff]
    %v62 = vld [vmem:[#allocation2 + $0x28] sm:$0xff]
    %v63 = vld [vmem:[#allocation2 + $0x30] sm:$0xff]
    %v64 = vld [vmem:[#allocation2 + $0x38] sm:$0xff]
    %v65 = vld [vmem:[#allocation2 + $0x40] sm:$0xff]
    %v66 = vld [vmem:[#allocation2 + $0x48] sm:$0xff]
    %v67 = vld [vmem:[#allocation2 + $0x50] sm:$0xff]
    %v68 = vld [vmem:[#allocation2 + $0x58] sm:$0xff]
    %v69 = vld [vmem:[#allocation2 + $0x60] sm:$0xff]
    %v70 = vld [vmem:[#allocation2 + $0x68] sm:$0xff]
    %v71 = vld [vmem:[#allocation2 + $0x70] sm:$0xff]
    %v72 = vld [vmem:[#allocation2 + $0x78] sm:$0xff]
    %v73 = vld [vmem:[#allocation2 + $0x80] sm:$0xff]
    %v74 = vld [vmem:[#allocation2 + $0x88] sm:$0xff]
    %v75 = vld [vmem:[#allocation2 + $0x90] sm:$0xff]
    %v76 = vld [vmem:[#allocation2 + $0x98] sm:$0xff]
    %v77 = vld [vmem:[#allocation2 + $0xa0] sm:$0xff]
    %v78 = vld [vmem:[#allocation2 + $0xa8] sm:$0xff]
    %v79 = vld [vmem:[#allocation2 + $0xb0] sm:$0xff]
    %v80 = vld [vmem:[#allocation2 + $0xb8] sm:$0xff]
    %vm81 = vcmask 523264
    %v83 = vsel %vm81, %v53, 0
    %v86 = vsel %vm81, %v54, 0
    %v89 = vsel %vm81, %v55, 0
    %v92 = vsel %vm81, %v56, 0
    %94 = vmatpush.msra.mxu0 0.0
    %95 = vmatpush.msra.mxu0 0.0
    %96 = vmatpush.msra.mxu0 0.0
    %97 = vmatpush.msra.mxu0 0.0
    %98 = vmatpush.msra.mxu0 0.0
    %99 = vmatpush.msra.mxu0 0.0
    %100 = vmatpush.msra.mxu0 0.0
    %101 = vmatpush.msra.mxu0 0.0
    %102 = vmatpush.msra.mxu0 %v78
    %103 = vmatpush.msra.mxu0 %v75
    %104 = vmatpush.msra.mxu0 %v72
    %105 = vmatpush.msra.mxu0 %v69
    %106 = vmatpush.msra.mxu0 %v66
    %107 = vmatpush.msra.mxu0 %v63
    %108 = vmatpush.msra.mxu0 %v60
    %109 = vmatpush.msra.mxu0 %v57
    %110 = vmatmul.f32.gmra.mxu0 %v83
    %v111 = vpop.f32.mrf.mxu0
    %v112 = vadd.f32 0.0, %v111
    %113 = vmatmul.f32.gmra.mxu0 %v86
    %v114 = vpop.f32.mrf.mxu0
    %v115 = vadd.f32 0.0, %v114
    %116 = vmatmul.f32.gmra.mxu0 %v89
    %v117 = vpop.f32.mrf.mxu0
    %v118 = vadd.f32 0.0, %v117
    %119 = vmatmul.f32.gmra.mxu0 %v92
    %v120 = vpop.f32.mrf.mxu0
    %v121 = vadd.f32 0.0, %v120
    %122 = vdwg.mxu0
    %123 = vmatpush.msra.mxu0 0.0
    %124 = vmatpush.msra.mxu0 0.0
    %125 = vmatpush.msra.mxu0 0.0
    %126 = vmatpush.msra.mxu0 0.0
    %127 = vmatpush.msra.mxu0 0.0
    %128 = vmatpush.msra.mxu0 0.0
    %129 = vmatpush.msra.mxu0 0.0
    %130 = vmatpush.msra.mxu0 0.0
    %131 = vmatpush.msra.mxu0 %v79
    %132 = vmatpush.msra.mxu0 %v76
    %133 = vmatpush.msra.mxu0 %v73
    %134 = vmatpush.msra.mxu0 %v70
    %135 = vmatpush.msra.mxu0 %v67
    %136 = vmatpush.msra.mxu0 %v64
    %137 = vmatpush.msra.mxu0 %v61
    %138 = vmatpush.msra.mxu0 %v58
    %139 = vmatmul.f32.gmra.mxu0 %v83
    %v140 = vpop.f32.mrf.mxu0
    %v141 = vadd.f32 0.0, %v140
    %142 = vmatmul.f32.gmra.mxu0 %v86
    %v143 = vpop.f32.mrf.mxu0
    %v144 = vadd.f32 0.0, %v143
    %145 = vmatmul.f32.gmra.mxu0 %v89
    %v146 = vpop.f32.mrf.mxu0
    %v147 = vadd.f32 0.0, %v146
    %148 = vmatmul.f32.gmra.mxu0 %v92
    %v149 = vpop.f32.mrf.mxu0
    %v150 = vadd.f32 0.0, %v149
    %151 = vdwg.mxu0
    %152 = vmatpush.msra.mxu0 0.0
    %153 = vmatpush.msra.mxu0 0.0
    %154 = vmatpush.msra.mxu0 0.0
    %155 = vmatpush.msra.mxu0 0.0
    %156 = vmatpush.msra.mxu0 0.0
    %157 = vmatpush.msra.mxu0 0.0
    %158 = vmatpush.msra.mxu0 0.0
    %159 = vmatpush.msra.mxu0 0.0
    %160 = vmatpush.msra.mxu0 %v80
    %161 = vmatpush.msra.mxu0 %v77
    %162 = vmatpush.msra.mxu0 %v74
    %163 = vmatpush.msra.mxu0 %v71
    %164 = vmatpush.msra.mxu0 %v68
    %165 = vmatpush.msra.mxu0 %v65
    %166 = vmatpush.msra.mxu0 %v62
    %167 = vmatpush.msra.mxu0 %v59
    %168 = vmatmul.f32.gmra.mxu0 %v83
    %v169 = vpop.f32.mrf.mxu0
    %v170 = vadd.f32 0.0, %v169
    %171 = vmatmul.f32.gmra.mxu0 %v86
    %v172 = vpop.f32.mrf.mxu0
    %v173 = vadd.f32 0.0, %v172
    %174 = vmatmul.f32.gmra.mxu0 %v89
    %v175 = vpop.f32.mrf.mxu0
    %v176 = vadd.f32 0.0, %v175
    %177 = vmatmul.f32.gmra.mxu0 %v92
    %v178 = vpop.f32.mrf.mxu0
    %v179 = vadd.f32 0.0, %v178
    %180 = vdwg.mxu0
    %v181 = vlaneseq
    %v182 = vshrl.u32 %v181, 7
    %v183 = vadd.s32 %v182, 8
    %v184 = vadd.s32 %v182, 16
    %v185 = vadd.s32 %v182, 24
    %vm186 = vcmp.lt.s32.totalorder %v182, 0
    %v187 = vsub.s32 0, %v182
    %v188 = vsel %vm186, %v187, %v182
    %v189 = vshrl.u32 %v188, 4
    %v190 = vand.u32 %v188, 15
    %v191 = vsub.s32 0, %v190
    %v192 = vsel %vm186, %v191, %v190
    %vm193 = vcmp.lt.s32.totalorder %v183, 0
    %v194 = vsub.s32 0, %v183
    %v195 = vsel %vm193, %v194, %v183
    %v196 = vshrl.u32 %v195, 4
    %v197 = vand.u32 %v195, 15
    %v198 = vsub.s32 0, %v197
    %v199 = vsel %vm193, %v198, %v197
    %vm200 = vcmp.lt.s32.totalorder %v184, 0
    %v201 = vsub.s32 0, %v184
    %v202 = vsel %vm200, %v201, %v184
    %v203 = vshrl.u32 %v202, 4
    %v204 = vand.u32 %v202, 15
    %v205 = vsub.s32 0, %v204
    %v206 = vsel %vm200, %v205, %v204
    %vm207 = vcmp.lt.s32.totalorder %v185, 0
    %v208 = vsub.s32 0, %v185
    %v209 = vsel %vm207, %v208, %v185
    %v210 = vshrl.u32 %v209, 4
    %v211 = vand.u32 %v209, 15
    %v212 = vsub.s32 0, %v211
    %v213 = vsel %vm207, %v212, %v211
    %vm214 = vcmp.ne.s32.totalorder %v192, 0
    %vm215 = vcmp.ne.s32.totalorder %v199, 0
    %vm216 = vcmp.ne.s32.totalorder %v206, 0
    %vm217 = vcmp.ne.s32.totalorder %v213, 0
    %vm218 = vcmp.lt.s32.totalorder %v192, 0
    %vm219 = vcmp.lt.s32.totalorder %v199, 0
    %vm220 = vcmp.lt.s32.totalorder %v206, 0
    %vm221 = vcmp.lt.s32.totalorder %v213, 0
    %vm222 = vmand %vm218, %vm214
    %vm223 = vmand %vm219, %vm215
    %vm224 = vmand %vm220, %vm216
    %vm225 = vmand %vm221, %vm217
    %v226 = vadd.s32 %v192, 16
    %v227 = vadd.s32 %v199, 16
    %v228 = vadd.s32 %v206, 16
    %v229 = vadd.s32 %v213, 16
    %v230 = vsel %vm222, %v226, %v192
    %v231 = vsel %vm223, %v227, %v199
    %v232 = vsel %vm224, %v228, %v206
    %v233 = vsel %vm225, %v229, %v213
    %vm234 = vcmp.ge.s32.totalorder %v230, 1
    %vm235 = vcmp.ge.s32.totalorder %v231, 1
    %vm236 = vcmp.ge.s32.totalorder %v232, 1
    %vm237 = vcmp.ge.s32.totalorder %v233, 1
    %v238 = vrot.slane %v112, 7
    %v239 = vrot.slane %v115, 7
    %v240 = vrot.slane %v118, 7
    %v241 = vrot.slane %v121, 7
    %vm242 = vcmp.lt.s32.totalorder %v182, 1
    %v243 = vsel %vm242, %v240, %v241
    %v244 = vsel %vm242, %v239, %v240
    %v245 = vsel %vm242, %v238, %v239
    %v246 = vsel %vm242, %v241, %v238
    %v247 = vsel %vm234, 1, 0
    %v248 = vsel %vm235, 1, 0
    %v249 = vsel %vm236, 1, 0
    %v250 = vsel %vm237, 1, 0
    %vm251 = vcmp.eq.s32.totalorder %v247, 1
    %vm252 = vcmp.eq.s32.totalorder %v248, 1
    %vm253 = vcmp.eq.s32.totalorder %v249, 1
    %vm254 = vcmp.eq.s32.totalorder %v250, 1
    %v255 = vsel %vm251, %v246, 0.0
    %v256 = vsel %vm252, %v245, 0.0
    %v257 = vsel %vm253, %v244, 0.0
    %v258 = vsel %vm254, %v243, 0.0
    %vm259 = vcmp.le.s32.totalorder %v230, 14
    %vm260 = vcmp.le.s32.totalorder %v231, 14
    %vm261 = vcmp.le.s32.totalorder %v232, 14
    %vm262 = vcmp.le.s32.totalorder %v233, 14
    %v263 = vrot.slane %v170, 1
    %v264 = vrot.slane %v173, 1
    %v265 = vrot.slane %v176, 1
    %v266 = vrot.slane %v179, 1
    %vm267 = vcmp.lt.s32.totalorder %v182, 7
    %v268 = vsel %vm267, %v265, %v266
    %v269 = vsel %vm267, %v264, %v265
    %v270 = vsel %vm267, %v263, %v264
    %v271 = vsel %vm267, %v266, %v263
    %v272 = vsel %vm259, 1, 0
    %v273 = vsel %vm260, 1, 0
    %v274 = vsel %vm261, 1, 0
    %v275 = vsel %vm262, 1, 0
    %vm276 = vcmp.eq.s32.totalorder %v272, 1
    %vm277 = vcmp.eq.s32.totalorder %v273, 1
    %vm278 = vcmp.eq.s32.totalorder %v274, 1
    %vm279 = vcmp.eq.s32.totalorder %v275, 1
    %v280 = vsel %vm276, %v270, 0.0
    %v281 = vsel %vm277, %v269, 0.0
    %v282 = vsel %vm278, %v268, 0.0
    %v283 = vsel %vm279, %v271, 0.0
    %v284 = vadd.f32 %v141, %v255
    %v285 = vadd.f32 %v144, %v256
    %v286 = vadd.f32 %v147, %v257
    %v287 = vadd.f32 %v150, %v258
    %v288 = vadd.f32 %v284, %v280
    %v289 = vadd.f32 %v285, %v281
    %v290 = vadd.f32 %v286, %v282
    %v291 = vadd.f32 %v287, %v283
    %v292 = vld [vmem:[%s2] sm:$0x1]
    %v294 = vperm.slane %v292, 0
    %v296 = vadd.f32 %v288, %v294
    %v297 = vadd.f32 %v289, %v294
    %v298 = vadd.f32 %v290, %v294
    %v299 = vadd.f32 %v291, %v294
    %v300 = vmax.f32 %v296, 0.0
    %v301 = vmax.f32 %v297, 0.0
    %v302 = vmax.f32 %v298, 0.0
    %v303 = vmax.f32 %v299, 0.0
    %v304 = vld [vmem:[#allocation5] sm:$0xff]
    %v305 = vld [vmem:[#allocation5 + $0x8] sm:$0xff]
    %v306 = vld [vmem:[#allocation5 + $0x10] sm:$0xff]
    %v307 = vld [vmem:[#allocation5 + $0x18] sm:$0xff]
    %v308 = vld [vmem:[#allocation5 + $0x20] sm:$0xff]
    %v309 = vld [vmem:[#allocation5 + $0x28] sm:$0xff]
    %v310 = vld [vmem:[#allocation5 + $0x30] sm:$0xff]
    %v311 = vld [vmem:[#allocation5 + $0x38] sm:$0xff]
    %v312 = vld [vmem:[#allocation5 + $0x40] sm:$0xff]
    %v313 = vld [vmem:[#allocation5 + $0x48] sm:$0xff]
    %v314 = vld [vmem:[#allocation5 + $0x50] sm:$0xff]
    %v315 = vld [vmem:[#allocation5 + $0x58] sm:$0xff]
    %v316 = vld [vmem:[#allocation5 + $0x60] sm:$0xff]
    %v317 = vld [vmem:[#allocation5 + $0x68] sm:$0xff]
    %v318 = vld [vmem:[#allocation5 + $0x70] sm:$0xff]
    %v319 = vld [vmem:[#allocation5 + $0x78] sm:$0xff]
    %v320 = vld [vmem:[#allocation5 + $0x80] sm:$0xff]
    %v321 = vld [vmem:[#allocation5 + $0x88] sm:$0xff]
    %v322 = vld [vmem:[#allocation5 + $0x90] sm:$0xff]
    %v323 = vld [vmem:[#allocation5 + $0x98] sm:$0xff]
    %v324 = vld [vmem:[#allocation5 + $0xa0] sm:$0xff]
    %v325 = vld [vmem:[#allocation5 + $0xa8] sm:$0xff]
    %v326 = vld [vmem:[#allocation5 + $0xb0] sm:$0xff]
    %v327 = vld [vmem:[#allocation5 + $0xb8] sm:$0xff]
    %v328 = vld [vmem:[#allocation5 + $0xc0] sm:$0xff]
    %v329 = vld [vmem:[#allocation5 + $0xc8] sm:$0xff]
    %v330 = vld [vmem:[#allocation5 + $0xd0] sm:$0xff]
    %v331 = vld [vmem:[#allocation5 + $0xd8] sm:$0xff]
    %v332 = vld [vmem:[#allocation5 + $0xe0] sm:$0xff]
    %v333 = vld [vmem:[#allocation5 + $0xe8] sm:$0xff]
    %v334 = vld [vmem:[#allocation5 + $0xf0] sm:$0xff]
    %v335 = vld [vmem:[#allocation5 + $0xf8] sm:$0xff]
    %336 = vmatpush.msra.mxu0 %v334
    %337 = vmatpush.msra.mxu0 %v332
    %338 = vmatpush.msra.mxu0 %v330
    %339 = vmatpush.msra.mxu0 %v328
    %340 = vmatpush.msra.mxu0 %v326
    %341 = vmatpush.msra.mxu0 %v324
    %342 = vmatpush.msra.mxu0 %v322
    %343 = vmatpush.msra.mxu0 %v320
    %344 = vmatpush.msra.mxu0 %v318
    %345 = vmatpush.msra.mxu0 %v316
    %346 = vmatpush.msra.mxu0 %v314
    %347 = vmatpush.msra.mxu0 %v312
    %348 = vmatpush.msra.mxu0 %v310
    %349 = vmatpush.msra.mxu0 %v308
    %350 = vmatpush.msra.mxu0 %v306
    %351 = vmatpush.msra.mxu0 %v304
    %352 = vmatmul.f32.gmra.mxu0 %v300
    %v353 = vpop.f32.mrf.mxu0
    %v354 = vadd.f32 0.0, %v353
    %355 = vmatmul.f32.gmra.mxu0 %v301
    %v356 = vpop.f32.mrf.mxu0
    %v357 = vadd.f32 0.0, %v356
    %358 = vmatmul.f32.gmra.mxu0 %v302
    %v359 = vpop.f32.mrf.mxu0
    %v360 = vadd.f32 0.0, %v359
    %361 = vmatmul.f32.gmra.mxu0 %v303
    %v362 = vpop.f32.mrf.mxu0
    %v363 = vadd.f32 0.0, %v362
    %364 = vdwg.mxu0
    %365 = vmatpush.msra.mxu0 %v335
    %366 = vmatpush.msra.mxu0 %v333
    %367 = vmatpush.msra.mxu0 %v331
    %368 = vmatpush.msra.mxu0 %v329
    %369 = vmatpush.msra.mxu0 %v327
    %370 = vmatpush.msra.mxu0 %v325
    %371 = vmatpush.msra.mxu0 %v323
    %372 = vmatpush.msra.mxu0 %v321
    %373 = vmatpush.msra.mxu0 %v319
    %374 = vmatpush.msra.mxu0 %v317
    %375 = vmatpush.msra.mxu0 %v315
    %376 = vmatpush.msra.mxu0 %v313
    %377 = vmatpush.msra.mxu0 %v311
    %378 = vmatpush.msra.mxu0 %v309
    %379 = vmatpush.msra.mxu0 %v307
    %380 = vmatpush.msra.mxu0 %v305
    %381 = vmatmul.f32.gmra.mxu0 %v300
    %v382 = vpop.f32.mrf.mxu0
    %v383 = vadd.f32 0.0, %v382
    %384 = vmatmul.f32.gmra.mxu0 %v301
    %v385 = vpop.f32.mrf.mxu0
    %v386 = vadd.f32 0.0, %v385
    %387 = vmatmul.f32.gmra.mxu0 %v302
    %v388 = vpop.f32.mrf.mxu0
    %v389 = vadd.f32 0.0, %v388
    %390 = vmatmul.f32.gmra.mxu0 %v303
    %v391 = vpop.f32.mrf.mxu0
    %v392 = vadd.f32 0.0, %v391
    %393 = vdwg.mxu0
    %v394 = vld [vmem:[%s3] sm:$0xff]
    %v395 = vld [vmem:[%s3 + $0x8] sm:$0xff]
    %v396 = vld [vmem:[%s3 + $0x10] sm:$0xff]
    %v397 = vld [vmem:[%s3 + $0x18] sm:$0xff]
    %vm398 = vcmask 130048
    %v400 = vsel %vm398, %v394, 0
    %v403 = vsel %vm398, %v395, 0
    %v406 = vsel %vm398, %v396, 0
    %v409 = vsel %vm398, %v397, 0
    %411 = vmatpush.msra.mxu0 0.0
    %412 = vmatpush.msra.mxu0 0.0
    %413 = vmatpush.msra.mxu0 0.0
    %414 = vmatpush.msra.mxu0 0.0
    %415 = vmatpush.msra.mxu0 0.0
    %416 = vmatpush.msra.mxu0 0.0
    %417 = vmatpush.msra.mxu0 0.0
    %418 = vmatpush.msra.mxu0 0.0
    %419 = vmatpush.msra.mxu0 0.0
    %420 = vmatpush.msra.mxu0 0.0
    %421 = vmatpush.msra.mxu0 0.0
    %422 = vmatpush.msra.mxu0 0.0
    %423 = vmatpush.msra.mxu0 0.0
    %424 = vmatpush.msra.mxu0 0.0
    %425 = vmatpush.msra.mxu0 %v357
    %426 = vmatpush.msra.mxu0 %v354
    %427 = vmatmul.f32.gmra.mxu0 %v400
    %v428 = vpop.f32.mrf.mxu0
    %v429 = vadd.f32 0.0, %v428
    %430 = vmatmul.f32.gmra.mxu0 %v403
    %v431 = vpop.f32.mrf.mxu0
    %v432 = vadd.f32 0.0, %v431
    %433 = vmatmul.f32.gmra.mxu0 %v406
    %v434 = vpop.f32.mrf.mxu0
    %v435 = vadd.f32 0.0, %v434
    %436 = vmatmul.f32.gmra.mxu0 %v409
    %v437 = vpop.f32.mrf.mxu0
    %v438 = vadd.f32 0.0, %v437
    %439 = vdwg.mxu0
    %440 = vmatpush.msra.mxu0 0.0
    %441 = vmatpush.msra.mxu0 0.0
    %442 = vmatpush.msra.mxu0 0.0
    %443 = vmatpush.msra.mxu0 0.0
    %444 = vmatpush.msra.mxu0 0.0
    %445 = vmatpush.msra.mxu0 0.0
    %446 = vmatpush.msra.mxu0 0.0
    %447 = vmatpush.msra.mxu0 0.0
    %448 = vmatpush.msra.mxu0 0.0
    %449 = vmatpush.msra.mxu0 0.0
    %450 = vmatpush.msra.mxu0 0.0
    %451 = vmatpush.msra.mxu0 0.0
    %452 = vmatpush.msra.mxu0 0.0
    %453 = vmatpush.msra.mxu0 0.0
    %454 = vmatpush.msra.mxu0 %v386
    %455 = vmatpush.msra.mxu0 %v383
    %456 = vmatmul.f32.gmra.mxu0 %v400
    %v457 = vpop.f32.mrf.mxu0
    %v458 = vadd.f32 0.0, %v457
    %459 = vmatmul.f32.gmra.mxu0 %v403
    %v460 = vpop.f32.mrf.mxu0
    %v461 = vadd.f32 0.0, %v460
    %462 = vmatmul.f32.gmra.mxu0 %v406
    %v463 = vpop.f32.mrf.mxu0
    %v464 = vadd.f32 0.0, %v463
    %465 = vmatmul.f32.gmra.mxu0 %v409
    %v466 = vpop.f32.mrf.mxu0
    %v467 = vadd.f32 0.0, %v466
    %468 = vdwg.mxu0
    %469 = vmatpush.msra.mxu0 0.0
    %470 = vmatpush.msra.mxu0 0.0
    %471 = vmatpush.msra.mxu0 0.0
    %472 = vmatpush.msra.mxu0 0.0
    %473 = vmatpush.msra.mxu0 0.0
    %474 = vmatpush.msra.mxu0 0.0
    %475 = vmatpush.msra.mxu0 0.0
    %476 = vmatpush.msra.mxu0 0.0
    %477 = vmatpush.msra.mxu0 0.0
    %478 = vmatpush.msra.mxu0 0.0
    %479 = vmatpush.msra.mxu0 0.0
    %480 = vmatpush.msra.mxu0 0.0
    %481 = vmatpush.msra.mxu0 0.0
    %482 = vmatpush.msra.mxu0 0.0
    %483 = vmatpush.msra.mxu0 %v363
    %484 = vmatpush.msra.mxu0 %v360
    %485 = vmatmul.f32.gmra.mxu0 %v400
    %v486 = vpop.f32.mrf.mxu0
    %v487 = vadd.f32 0.0, %v486
    %488 = vmatmul.f32.gmra.mxu0 %v403
    %v489 = vpop.f32.mrf.mxu0
    %v490 = vadd.f32 0.0, %v489
    %491 = vmatmul.f32.gmra.mxu0 %v406
    %v492 = vpop.f32.mrf.mxu0
    %v493 = vadd.f32 0.0, %v492
    %494 = vmatmul.f32.gmra.mxu0 %v409
    %v495 = vpop.f32.mrf.mxu0
    %v496 = vadd.f32 0.0, %v495
    %497 = vdwg.mxu0
    %498 = vmatpush.msra.mxu0 0.0
    %499 = vmatpush.msra.mxu0 0.0
    %500 = vmatpush.msra.mxu0 0.0
    %501 = vmatpush.msra.mxu0 0.0
    %502 = vmatpush.msra.mxu0 0.0
    %503 = vmatpush.msra.mxu0 0.0
    %504 = vmatpush.msra.mxu0 0.0
    %505 = vmatpush.msra.mxu0 0.0
    %506 = vmatpush.msra.mxu0 0.0
    %507 = vmatpush.msra.mxu0 0.0
    %508 = vmatpush.msra.mxu0 0.0
    %509 = vmatpush.msra.mxu0 0.0
    %510 = vmatpush.msra.mxu0 0.0
    %511 = vmatpush.msra.mxu0 0.0
    %512 = vmatpush.msra.mxu0 %v392
    %513 = vmatpush.msra.mxu0 %v389
    %514 = vmatmul.f32.gmra.mxu0 %v400
    %v515 = vpop.f32.mrf.mxu0
    %v516 = vadd.f32 0.0, %v515
    %517 = vmatmul.f32.gmra.mxu0 %v403
    %v518 = vpop.f32.mrf.mxu0
    %v519 = vadd.f32 0.0, %v518
    %520 = vmatmul.f32.gmra.mxu0 %v406
    %v521 = vpop.f32.mrf.mxu0
    %v522 = vadd.f32 0.0, %v521
    %523 = vmatmul.f32.gmra.mxu0 %v409
    %v524 = vpop.f32.mrf.mxu0
    %v525 = vadd.f32 0.0, %v524
    %526 = vdwg.mxu0
    %527 = vst [vmem:[#allocation7] sm:$0xff] %v429
    %528 = vst [vmem:[#allocation7 + $0x8] sm:$0xff] %v458
    %529 = vst [vmem:[#allocation7 + $0x10] sm:$0xff] %v432
    %530 = vst [vmem:[#allocation7 + $0x18] sm:$0xff] %v461
    %531 = vst [vmem:[#allocation7 + $0x20] sm:$0xff] %v435
    %532 = vst [vmem:[#allocation7 + $0x28] sm:$0xff] %v464
    %533 = vst [vmem:[#allocation7 + $0x30] sm:$0xff] %v438
    %534 = vst [vmem:[#allocation7 + $0x38] sm:$0xff] %v467
    %535 = vst [vmem:[#allocation7 + $0x40] sm:$0xff] %v487
    %536 = vst [vmem:[#allocation7 + $0x48] sm:$0xff] %v516
    %537 = vst [vmem:[#allocation7 + $0x50] sm:$0xff] %v490
    %538 = vst [vmem:[#allocation7 + $0x58] sm:$0xff] %v519
    %539 = vst [vmem:[#allocation7 + $0x60] sm:$0xff] %v493
    %540 = vst [vmem:[#allocation7 + $0x68] sm:$0xff] %v522
    %541 = vst [vmem:[#allocation7 + $0x70] sm:$0xff] %v496
    %542 = vst [vmem:[#allocation7 + $0x78] sm:$0xff] %v525
    // Predicated region
    $region30: #{tpu_custom_call.1} parent=1 // pred_check
      _
    $region31: #{tpu_custom_call.1} parent=1 // pred_check_branch
      %544 = sbr.rel (0) target = $region33
    $region32: #{tpu_custom_call.1} parent=1 // pred_region
      %546 = vsyncadd [#allocation4], 0
      %s547 = sshll.u32 [#allocation7], 4
      %s548 = int_to_ptr.vmem [resolvable:$true] %s547
      %s549 = sshll.u32 %s5, 4
      %s550 = int_to_ptr.hbm [resolvable:$true] %s549
      %555 = dma.vmem_to_hbm [thread:$0]  %s548, 2048, %s550, [#allocation4], 256, 256, 16
    $region33: #{tpu_custom_call.1} parent=1 // pred_fallthru
      _
    // Predicated region
    $region34: #{tpu_custom_call.1} parent=1 // pred_check
      _
    $region35: #{tpu_custom_call.1} parent=1 // pred_check_branch
      %557 = sbr.rel (0) target = $region37
    $region36: #{tpu_custom_call.1} parent=1 // pred_region
      %559 = dma.done [#allocation4], 2048
    $region37: #{tpu_custom_call.1} parent=1 // pred_fallthru
      _
    %560 = vsyncpa [#allocation3], 1
    %561 = vsyncpa [#allocation6], 1
    %562 = vsyncpa [#allocation4], 1

</llo_original>
